<compile_context>
chip_gen: v6e
topology: v6e:2x2x1
jax: 0.10.0
libtpu: 0.0.40
codegen_flags: <defaults>
</compile_context>

<pallas_src>
import numpy as np
import jax
import jax.numpy as jnp
from jax.experimental import pallas as pl
from jax.experimental.pallas import tpu as pltpu

SIZES = (1, 2, 3, 6)


def _padded_layout(sizes):
    """Per-stage (start, end, real_cells); each stage padded to a multiple of 8 rows."""
    layout, off = [], 0
    for s in sizes:
        cells = s * s
        padded = -(-cells // 8) * 8
        layout.append((off, off + padded, cells))
        off += padded
    return tuple(layout), off


PAD_LAYOUT, TOTAL_PADDED = _padded_layout(SIZES)    # (0,8),(8,16),(16,32),(32,72); 72 rows


# ----------------------------------------------------------------------------
# Pooling / upsampling matrices (exact PyTorch semantics), built once in numpy.
# ----------------------------------------------------------------------------
def adaptive_pool_matrix(H, W, s):
    """(s*s, H*W) matrix whose rows average the AdaptiveAvgPool2d((s,s)) regions."""
    A = np.zeros((s * s, H * W), np.float32)
    for i in range(s):
        sh = (i * H) // s
        eh = -((-(i + 1) * H) // s)          # ceil((i+1)*H/s)
        for j in range(s):
            sw = (j * W) // s
            ew = -((-(j + 1) * W) // s)
            wgt = 1.0 / ((eh - sh) * (ew - sw))
            for y in range(sh, eh):
                for x in range(sw, ew):
                    A[i * s + j, y * W + x] = wgt
    return A


def bilinear_up_matrix(H, W, s):
    """(H*W, s*s) bilinear (align_corners=True) upsample matrix from (s,s)."""
    M = np.zeros((H * W, s * s), np.float32)
    for y in range(H):
        for x in range(W):
            r = y * W + x
            if s == 1:
                M[r, 0] = 1.0
                continue
            sy = y * (s - 1) / (H - 1) if H > 1 else 0.0   # guard degenerate H/W
            sx = x * (s - 1) / (W - 1) if W > 1 else 0.0
            y0 = min(int(np.floor(sy)), s - 2)
            x0 = min(int(np.floor(sx)), s - 2)
            wy = sy - y0
            wx = sx - x0
            M[r, y0 * s + x0] += (1 - wy) * (1 - wx)
            M[r, y0 * s + x0 + 1] += (1 - wy) * wx
            M[r, (y0 + 1) * s + x0] += wy * (1 - wx)
            M[r, (y0 + 1) * s + x0 + 1] += wy * wx
    return M


# ----------------------------------------------------------------------------
# Pass 1: adaptive pooling (accumulated over HW row tiles) + per-stage 1x1 convs.
# ----------------------------------------------------------------------------
def pool_stage_kernel(x_ref, a_ref, ws_ref, pall_ref, pooled_acc):
    r = pl.program_id(1)

    @pl.when(r == 0)
    def _():
        pooled_acc[...] = jnp.zeros_like(pooled_acc)

    # (T_pad, R) @ (R, C_in) -> (T_pad, C_in), f32 accumulation across row tiles.
    pooled_acc[...] += jnp.dot(a_ref[...], x_ref[0],
                               preferred_element_type=jnp.float32)

    @pl.when(r == pl.num_programs(1) - 1)
    def _():
        pooled = pooled_acc[...].astype(jnp.bfloat16)
        # Per-stage 1x1 conv (+folded BN scale); slices are 8-aligned (free views).
        for s, (st, en, _) in enumerate(PAD_LAYOUT):
            p = jnp.dot(pooled[st:en], ws_ref[s],
                        preferred_element_type=jnp.float32)
            pall_ref[0, st:en, :] = p.astype(jnp.bfloat16)


# ----------------------------------------------------------------------------
# Pass 2: down conv + fused pyramid upsample + bottleneck conv + ReLU.
# ----------------------------------------------------------------------------
def main_kernel(x_ref, m_ref, pall_ref, wd_ref, bt_ref, wb_ref, bb_ref, o_ref):
    x = x_ref[0]                                                        # (R, C_in) bf16
    # down branch: 1x1 conv (BN folded)
    sum_feat = jnp.dot(x, wd_ref[...], preferred_element_type=jnp.float32)
    # ALL pyramid stages upsampled + summed in ONE matmul: (R, T_pad) @ (T_pad, Cp)
    sum_feat += jnp.dot(m_ref[...], pall_ref[0],
                        preferred_element_type=jnp.float32)
    # down bias + all stage biases (folded on host; bilinear rows sum to 1)
    sum_feat += bt_ref[...]
    # bottleneck: 1x1 conv + folded BN + ReLU (Dropout2d identity in eval)
    pre = jnp.dot(sum_feat.astype(jnp.bfloat16), wb_ref[...],
                  preferred_element_type=jnp.float32) + bb_ref[...]
    o_ref[0] = jnp.maximum(pre, 0.0)


# ----------------------------------------------------------------------------
# Wrapper
# ----------------------------------------------------------------------------
def _pick_row_block(HW):
    for cand in (1024, 512, 256, 128):
        if HW % cand == 0:
            return cand
    return HW


def spsp_forward(x_nchw, params, *, row_block=None):
    N, C_in, H, W = x_nchw.shape
    HW = H * W
    A, M = params["A"], params["M"]
    T_pad = A.shape[0]
    Cp = params["wd"].shape[1]
    C_out = params["c_out"]

    if row_block is None:
        row_block = _pick_row_block(HW)
    assert HW % row_block == 0
    n_rt = HW // row_block

    x_flat = jnp.transpose(x_nchw, (0, 2, 3, 1)).reshape(N, HW, C_in)
    x_flat = x_flat.astype(jnp.bfloat16)

    cparams_pool = pltpu.CompilerParams(
        dimension_semantics=("parallel", "arbitrary"),
        vmem_limit_bytes=32 * 1024 * 1024)
    cparams_main = pltpu.CompilerParams(
        dimension_semantics=("parallel", "parallel"),
        vmem_limit_bytes=32 * 1024 * 1024)

    # Pass 1: pooled + per-stage convs -> p_all (N, T_pad, Cp) in bf16.
    p_all = pl.pallas_call(
        pool_stage_kernel,
        out_shape=jax.ShapeDtypeStruct((N, T_pad, Cp), jnp.bfloat16),
        grid_spec=pltpu.PrefetchScalarGridSpec(
            num_scalar_prefetch=0,
            grid=(N, n_rt),
            in_specs=[
                pl.BlockSpec((1, row_block, C_in), lambda n, r: (n, r, 0)),
                pl.BlockSpec((T_pad, row_block), lambda n, r: (0, r)),
                pl.BlockSpec(params["ws"].shape, lambda n, r: (0, 0, 0)),
            ],
            out_specs=pl.BlockSpec((1, T_pad, Cp), lambda n, r: (n, 0, 0)),
            scratch_shapes=[pltpu.VMEM((T_pad, C_in), jnp.float32)],
        ),
        compiler_params=cparams_pool,
    )(x_flat, A, params["ws"])

    # Pass 2: per row tile, down + fused upsample + bottleneck; lane-dense output.
    out = pl.pallas_call(
        main_kernel,
        out_shape=jax.ShapeDtypeStruct((N, HW, Cp), jnp.float32),
        grid_spec=pltpu.PrefetchScalarGridSpec(
            num_scalar_prefetch=0,
            grid=(N, n_rt),
            in_specs=[
                pl.BlockSpec((1, row_block, C_in), lambda n, r: (n, r, 0)),
                pl.BlockSpec((row_block, T_pad), lambda n, r: (r, 0)),
                pl.BlockSpec((1, T_pad, Cp), lambda n, r: (n, 0, 0)),
                pl.BlockSpec(params["wd"].shape, lambda n, r: (0, 0)),
                pl.BlockSpec(params["bt"].shape, lambda n, r: (0, 0)),
                pl.BlockSpec(params["wb"].shape, lambda n, r: (0, 0)),
                pl.BlockSpec(params["bb"].shape, lambda n, r: (0, 0)),
            ],
            out_specs=pl.BlockSpec((1, row_block, Cp), lambda n, r: (n, r, 0)),
        ),
        compiler_params=cparams_main,
    )(x_flat, M, p_all, params["wd"], params["bt"], params["wb"], params["bb"])

    out = out[:, :, :C_out]                       # drop lane padding
    return out.reshape(N, H, W, C_out).transpose(0, 3, 1, 2)   # back to NCHW


# ----------------------------------------------------------------------------
# Deterministic parameter init (conv weights; eval-mode BN folded; padding).
# ----------------------------------------------------------------------------
def init_params(key, C_in, C_out, H, W):
    eps = 1e-5
    Cp = max(128, ((C_out + 127) // 128) * 128)        # lane-dense padded channels
    keys = iter(jax.random.split(key, 2 * len(SIZES) + 4))

    def conv_w(k, cin, cout):
        # torch Conv2d weight (cout, cin, 1, 1); stored transposed for x @ W
        return jax.random.normal(k, (cin, cout), jnp.float32) / np.sqrt(cin)

    def bn_params(k, c):
        k1, k2 = jax.random.split(k)
        gamma = 1.0 + 0.1 * jax.random.normal(k1, (c,), jnp.float32)
        beta = 0.1 * jax.random.normal(k2, (c,), jnp.float32)
        return gamma, beta, jnp.zeros((c,), jnp.float32), jnp.ones((c,), jnp.float32)

    def fold(w, bnp):
        gamma, beta, mean, var = bnp
        scale = gamma / jnp.sqrt(var + eps)
        return w * scale[None, :], (beta - mean * scale)[None, :]

    def pad_w(w):                                      # (cin, C_out) -> (cin, Cp)
        return jnp.pad(w, ((0, 0), (0, Cp - C_out)))

    def pad_b(b):                                      # (1, C_out) -> (1, Cp)
        return jnp.pad(b, ((0, 0), (0, Cp - C_out)))

    ws, bs = [], []
    for _ in SIZES:
        w, b = fold(conv_w(next(keys), C_in, C_out), bn_params(next(keys), C_out))
        ws.append(pad_w(w))
        bs.append(b)
    ws = jnp.stack(ws).astype(jnp.bfloat16)            # (num_stages, C_in, Cp)

    wd, bd = fold(conv_w(next(keys), C_in, C_out), bn_params(next(keys), C_out))
    wb, bb = fold(conv_w(next(keys), C_out, C_out), bn_params(next(keys), C_out))

    # Fold all pyramid-stage biases into the down-conv bias (bilinear rows sum to 1).
    b_total = pad_b(bd + sum(bs))

    wd_p = pad_w(wd).astype(jnp.bfloat16)
    wb_p = jnp.zeros((Cp, Cp), jnp.float32).at[:C_out, :C_out].set(wb).astype(jnp.bfloat16)
    bb_p = pad_b(bb)

    # Pooling / upsample matrices with each stage padded to a multiple of 8 cells.
    A = np.zeros((TOTAL_PADDED, H * W), np.float32)
    M = np.zeros((H * W, TOTAL_PADDED), np.float32)
    for s, (st, en, cells) in zip(SIZES, PAD_LAYOUT):
        A[st:st + cells, :] = adaptive_pool_matrix(H, W, s)
        M[:, st:st + cells] = bilinear_up_matrix(H, W, s)

    return dict(A=jnp.asarray(A, jnp.bfloat16), M=jnp.asarray(M, jnp.bfloat16),
                wd=wd_p, ws=ws, wb=wb_p, bt=b_total, bb=bb_p, c_out=C_out)


# ----------------------------------------------------------------------------
# Pure-JAX reference with the SAME bf16 rounding points as the kernels.
# ----------------------------------------------------------------------------
def reference_forward(x_nchw, p):
    f32 = jnp.float32
    N, C_in, H, W = x_nchw.shape
    HW = H * W
    C_out = p["c_out"]
    x = jnp.transpose(x_nchw, (0, 2, 3, 1)).reshape(N, HW, C_in)
    x = x.astype(jnp.bfloat16).astype(f32)
    A = p["A"].astype(f32)
    M = p["M"].astype(f32)
    wd = p["wd"].astype(f32)
    ws = p["ws"].astype(f32)
    wb = p["wb"].astype(f32)

    pooled = jnp.einsum("th,nhc->ntc", A, x)
    pooled = pooled.astype(jnp.bfloat16).astype(f32)
    parts = [jnp.einsum("ntc,co->nto", pooled[:, st:en], ws[s])
             for s, (st, en, _) in enumerate(PAD_LAYOUT)]
    p_all = jnp.concatenate(parts, axis=1).astype(jnp.bfloat16).astype(f32)

    sum_feat = (jnp.einsum("nhc,co->nho", x, wd)
                + jnp.einsum("ht,nto->nho", M, p_all)
                + p["bt"])
    pre = jnp.einsum("nho,oq->nhq",
                     sum_feat.astype(jnp.bfloat16).astype(f32), wb) + p["bb"]
    out = jnp.maximum(pre, 0.0)[:, :, :C_out]
    return out.reshape(N, H, W, C_out).transpose(0, 3, 1, 2)


if __name__ == "__main__":
    N, C_in, H, W = 2, 8, 16, 16
    C_out = 32

    key = jax.random.PRNGKey(0)
    kx, kp = jax.random.split(key)
    x = jax.random.normal(kx, (N, C_in, H, W), jnp.float32)    # NCHW, like torch
    params = init_params(kp, C_in, C_out, H, W)

    # row_block=128 -> 2 row tiles, exercising the pooled accumulation path.
    out = spsp_forward(x, params, row_block=128)
    out = jax.block_until_ready(out)
    assert out.shape == (N, C_out, H, W)

    ref = reference_forward(x, params)
    # Kernel and reference share identical bf16 rounding points; residual
    # differences are f32 accumulation order (+ rare one-ulp double rounding).
    assert np.allclose(np.asarray(out), np.asarray(ref), atol=1e-2, rtol=1e-2), \
        float(np.max(np.abs(np.asarray(out) - np.asarray(ref))))

    print("KERNEL_OK")
</pallas_src>

<mosaic_0001>
module attributes {stable_mosaic.version = 11 : i64} {
  func.func @pool_stage_kernel(%arg0: i32, %arg1: i32, %arg2: memref<1x128x8xbf16, #tpu.memory_space<vmem>>, %arg3: memref<72x128xbf16, #tpu.memory_space<vmem>>, %arg4: memref<4x8x128xbf16, #tpu.memory_space<vmem>>, %arg5: memref<1x72x128xbf16, #tpu.memory_space<vmem>>, %arg6: memref<72x8xf32, #tpu.memory_space<vmem>>) attributes {dimension_semantics = [#tpu.dimension_semantics<parallel>, #tpu.dimension_semantics<arbitrary>], iteration_bounds = array<i64: 2, 2>, scalar_prefetch = 0 : i64, scratch_operands = 1 : i64, tpu.core_type = #tpu.core_type<tc>, window_params = [{transform_indices = @transform_0, window_bounds = array<i64: 1, 128, 8>}, {transform_indices = @transform_1, window_bounds = array<i64: 72, 128>}, {pipeline_mode = #tpu.pipeline_mode<synchronous>, transform_indices = @transform_2, window_bounds = array<i64: 4, 8, 128>}, {transform_indices = @transform_3, window_bounds = array<i64: 1, 72, 128>}]} {
    %c0_i32 = arith.constant 0 : i32
    %0 = arith.cmpi eq, %arg1, %c0_i32 : i32
    %1 = arith.extui %0 : i1 to i32
    %c0_i32_0 = arith.constant 0 : i32
    %2 = arith.cmpi ne, %1, %c0_i32_0 : i32
    scf.if %2 {
      %cst_10 = arith.constant 0.000000e+00 : f32
      %13 = vector.broadcast %cst_10 : f32 to vector<72x8xf32>
      %c0_11 = arith.constant 0 : index
      %c0_12 = arith.constant 0 : index
      %14 = vector.load %arg6[%c0_11, %c0_12] : memref<72x8xf32, #tpu.memory_space<vmem>>, vector<72x8xf32>
      tpu.vector_store %arg6[%c0_11, %c0_12], %13 {strides = array<i32>} : memref<72x8xf32, #tpu.memory_space<vmem>>, vector<72x8xf32>,
    } else {
    }
    %c0 = arith.constant 0 : index
    %c0_1 = arith.constant 0 : index
    %3 = vector.load %arg6[%c0, %c0_1] : memref<72x8xf32, #tpu.memory_space<vmem>>, vector<72x8xf32>
    %c0_2 = arith.constant 0 : index
    %c0_3 = arith.constant 0 : index
    %4 = vector.load %arg3[%c0_2, %c0_3] : memref<72x128xbf16, #tpu.memory_space<vmem>>, vector<72x128xbf16>
    %c0_4 = arith.constant 0 : index
    %c0_5 = arith.constant 0 : index
    %c0_6 = arith.constant 0 : index
    %5 = vector.load %arg2[%c0_4, %c0_5, %c0_6] : memref<1x128x8xbf16, #tpu.memory_space<vmem>>, vector<1x128x8xbf16>
    %6 = vector.shape_cast %5 : vector<1x128x8xbf16> to vector<128x8xbf16>
    %cst = arith.constant dense<0.000000e+00> : vector<72x8xf32>
    %7 = tpu.matmul %4, %6, %cst {dimension_numbers = #tpu.dot_dimension_numbers<[1], [0], [0], [1], [0, 0, 1, 1], [], []>} : vector<72x128xbf16>, vector<128x8xbf16>, vector<72x8xf32> -> vector<72x8xf32>
    %8 = arith.addf %3, %7 : vector<72x8xf32>
    %c0_7 = arith.constant 0 : index
    %c0_8 = arith.constant 0 : index
    %9 = vector.load %arg6[%c0_7, %c0_8] : memref<72x8xf32, #tpu.memory_space<vmem>>, vector<72x8xf32>
    tpu.vector_store %arg6[%c0_7, %c0_8], %8 {strides = array<i32>} : memref<72x8xf32, #tpu.memory_space<vmem>>, vector<72x8xf32>,
    %c1_i32 = arith.constant 1 : i32
    %10 = arith.cmpi eq, %arg1, %c1_i32 : i32
    %11 = arith.extui %10 : i1 to i32
    %c0_i32_9 = arith.constant 0 : i32
    %12 = arith.cmpi ne, %11, %c0_i32_9 : i32
    scf.if %12 {
      %c0_10 = arith.constant 0 : index
      %c0_11 = arith.constant 0 : index
      %13 = vector.load %arg6[%c0_10, %c0_11] : memref<72x8xf32, #tpu.memory_space<vmem>>, vector<72x8xf32>
      %14 = arith.truncf %13 : vector<72x8xf32> to vector<72x8xbf16>
      %15 = vector.extract_strided_slice %14 {offsets = [0, 0], sizes = [8, 8], strides = [1, 1]} : vector<72x8xbf16> to vector<8x8xbf16>
      %c0_12 = arith.constant 0 : index
      %c0_13 = arith.constant 0 : index
      %c0_14 = arith.constant 0 : index
      %16 = vector.load %arg4[%c0_12, %c0_13, %c0_14] : memref<4x8x128xbf16, #tpu.memory_space<vmem>>, vector<1x8x128xbf16>
      %17 = vector.shape_cast %16 : vector<1x8x128xbf16> to vector<8x128xbf16>
      %cst_15 = arith.constant dense<0.000000e+00> : vector<8x128xf32>
      %18 = tpu.matmul %15, %17, %cst_15 {dimension_numbers = #tpu.dot_dimension_numbers<[1], [0], [0], [1], [0, 0, 1, 1], [], []>} : vector<8x8xbf16>, vector<8x128xbf16>, vector<8x128xf32> -> vector<8x128xf32>
      %19 = arith.truncf %18 : vector<8x128xf32> to vector<8x128xbf16>
      %c0_16 = arith.constant 0 : index
      %c0_17 = arith.constant 0 : index
      %c0_18 = arith.constant 0 : index
      %20 = vector.load %arg5[%c0_16, %c0_17, %c0_18] : memref<1x72x128xbf16, #tpu.memory_space<vmem>>, vector<1x8x128xbf16>
      %21 = vector.shape_cast %20 : vector<1x8x128xbf16> to vector<8x128xbf16>
      %22 = vector.shape_cast %19 : vector<8x128xbf16> to vector<1x8x128xbf16>
      tpu.vector_store %arg5[%c0_16, %c0_17, %c0_18], %22 {strides = array<i32>} : memref<1x72x128xbf16, #tpu.memory_space<vmem>>, vector<1x8x128xbf16>,
      %23 = vector.extract_strided_slice %14 {offsets = [8, 0], sizes = [8, 8], strides = [1, 1]} : vector<72x8xbf16> to vector<8x8xbf16>
      %c1 = arith.constant 1 : index
      %c0_19 = arith.constant 0 : index
      %c0_20 = arith.constant 0 : index
      %24 = vector.load %arg4[%c1, %c0_19, %c0_20] : memref<4x8x128xbf16, #tpu.memory_space<vmem>>, vector<1x8x128xbf16>
      %25 = vector.shape_cast %24 : vector<1x8x128xbf16> to vector<8x128xbf16>
      %cst_21 = arith.constant dense<0.000000e+00> : vector<8x128xf32>
      %26 = tpu.matmul %23, %25, %cst_21 {dimension_numbers = #tpu.dot_dimension_numbers<[1], [0], [0], [1], [0, 0, 1, 1], [], []>} : vector<8x8xbf16>, vector<8x128xbf16>, vector<8x128xf32> -> vector<8x128xf32>
      %27 = arith.truncf %26 : vector<8x128xf32> to vector<8x128xbf16>
      %c0_22 = arith.constant 0 : index
      %c8 = arith.constant 8 : index
      %c0_23 = arith.constant 0 : index
      %28 = vector.load %arg5[%c0_22, %c8, %c0_23] : memref<1x72x128xbf16, #tpu.memory_space<vmem>>, vector<1x8x128xbf16>
      %29 = vector.shape_cast %28 : vector<1x8x128xbf16> to vector<8x128xbf16>
      %30 = vector.shape_cast %27 : vector<8x128xbf16> to vector<1x8x128xbf16>
      tpu.vector_store %arg5[%c0_22, %c8, %c0_23], %30 {strides = array<i32>} : memref<1x72x128xbf16, #tpu.memory_space<vmem>>, vector<1x8x128xbf16>,
      %31 = vector.extract_strided_slice %14 {offsets = [16, 0], sizes = [16, 8], strides = [1, 1]} : vector<72x8xbf16> to vector<16x8xbf16>
      %c2 = arith.constant 2 : index
      %c0_24 = arith.constant 0 : index
      %c0_25 = arith.constant 0 : index
      %32 = vector.load %arg4[%c2, %c0_24, %c0_25] : memref<4x8x128xbf16, #tpu.memory_space<vmem>>, vector<1x8x128xbf16>
      %33 = vector.shape_cast %32 : vector<1x8x128xbf16> to vector<8x128xbf16>
      %cst_26 = arith.constant dense<0.000000e+00> : vector<16x128xf32>
      %34 = tpu.matmul %31, %33, %cst_26 {dimension_numbers = #tpu.dot_dimension_numbers<[1], [0], [0], [1], [0, 0, 1, 1], [], []>} : vector<16x8xbf16>, vector<8x128xbf16>, vector<16x128xf32> -> vector<16x128xf32>
      %35 = arith.truncf %34 : vector<16x128xf32> to vector<16x128xbf16>
      %c0_27 = arith.constant 0 : index
      %c16 = arith.constant 16 : index
      %c0_28 = arith.constant 0 : index
      %36 = vector.load %arg5[%c0_27, %c16, %c0_28] : memref<1x72x128xbf16, #tpu.memory_space<vmem>>, vector<1x16x128xbf16>
      %37 = vector.shape_cast %36 : vector<1x16x128xbf16> to vector<16x128xbf16>
      %38 = vector.shape_cast %35 : vector<16x128xbf16> to vector<1x16x128xbf16>
      tpu.vector_store %arg5[%c0_27, %c16, %c0_28], %38 {strides = array<i32>} : memref<1x72x128xbf16, #tpu.memory_space<vmem>>, vector<1x16x128xbf16>,
      %39 = vector.extract_strided_slice %14 {offsets = [32, 0], sizes = [40, 8], strides = [1, 1]} : vector<72x8xbf16> to vector<40x8xbf16>
      %c3 = arith.constant 3 : index
      %c0_29 = arith.constant 0 : index
      %c0_30 = arith.constant 0 : index
      %40 = vector.load %arg4[%c3, %c0_29, %c0_30] : memref<4x8x128xbf16, #tpu.memory_space<vmem>>, vector<1x8x128xbf16>
      %41 = vector.shape_cast %40 : vector<1x8x128xbf16> to vector<8x128xbf16>
      %cst_31 = arith.constant dense<0.000000e+00> : vector<40x128xf32>
      %42 = tpu.matmul %39, %41, %cst_31 {dimension_numbers = #tpu.dot_dimension_numbers<[1], [0], [0], [1], [0, 0, 1, 1], [], []>} : vector<40x8xbf16>, vector<8x128xbf16>, vector<40x128xf32> -> vector<40x128xf32>
      %43 = arith.truncf %42 : vector<40x128xf32> to vector<40x128xbf16>
      %c0_32 = arith.constant 0 : index
      %c32 = arith.constant 32 : index
      %c0_33 = arith.constant 0 : index
      %44 = vector.load %arg5[%c0_32, %c32, %c0_33] : memref<1x72x128xbf16, #tpu.memory_space<vmem>>, vector<1x40x128xbf16>
      %45 = vector.shape_cast %44 : vector<1x40x128xbf16> to vector<40x128xbf16>
      %46 = vector.shape_cast %43 : vector<40x128xbf16> to vector<1x40x128xbf16>
      tpu.vector_store %arg5[%c0_32, %c32, %c0_33], %46 {strides = array<i32>} : memref<1x72x128xbf16, #tpu.memory_space<vmem>>, vector<1x40x128xbf16>,
    } else {
    }
    return
  }
  func.func @transform_0(%arg0: i32, %arg1: i32) -> (i32, i32, i32) {
    %c0_i32 = arith.constant 0 : i32
    %c0_i32_0 = arith.constant 0 : i32
    return %arg0, %arg1, %c0_i32 : i32, i32, i32
  }
  func.func @transform_1(%arg0: i32, %arg1: i32) -> (i32, i32) {
    %c0_i32 = arith.constant 0 : i32
    %c0_i32_0 = arith.constant 0 : i32
    return %c0_i32, %arg1 : i32, i32
  }
  func.func @transform_2(%arg0: i32, %arg1: i32) -> (i32, i32, i32) {
    %c0_i32 = arith.constant 0 : i32
    %c0_i32_0 = arith.constant 0 : i32
    %c0_i32_1 = arith.constant 0 : i32
    %c0_i32_2 = arith.constant 0 : i32
    return %c0_i32, %c0_i32_0, %c0_i32_1 : i32, i32, i32
  }
  func.func @transform_3(%arg0: i32, %arg1: i32) -> (i32, i32, i32) {
    %c0_i32 = arith.constant 0 : i32
    %c0_i32_0 = arith.constant 0 : i32
    %c0_i32_1 = arith.constant 0 : i32
    return %arg0, %c0_i32, %c0_i32_0 : i32, i32, i32
  }
}

</mosaic_0001>

<llo_original>
// kernel: tpu_custom_call.1
$region0: #{tpu_custom_call.1}
  #allocation0 [shape = 'u32[]', space=smem, size = 0x4, offset = 0x4, fixed_abs, tag = 'smem constant byte address 0x4 - core index']
  #allocation1 [shape = 'u32[144,128]{1,0:T(1,128)}', space=vmem, size = 0x12000, scoped, tag = 'internal scratch']
  #allocation2 [shape = 'f32[72,8]{1,0:T(8,128)}', space=vmem, size = 0x9000, scoped, tag = 'scratch operand']
  %s0 = inlined_call_operand.vmem [shape: bf16[2,256,8], index: 0, kind: input, shape index: {}]
  %s1 = inlined_call_operand.vmem [shape: bf16[72,256], index: 1, kind: input, shape index: {}]
  %s2 = inlined_call_operand.vmem [shape: bf16[4,8,128], index: 2, kind: input, shape index: {}]
  %s3 = inlined_call_operand.hbm [shape: bf16[2,72,128], index: 3, kind: output, shape index: {}]
  %s4 = sld [smem:[#allocation0]]
  $region94: #{tpu_custom_call.1} parent=0
    _
  %s6 = ssub.s32 1, %s4
  %s7 = scalar_select 0, %s6, %s4
  $region1: #{tpu_custom_call.1} parent=0
    #allocation3 [shape = 'u8[36864]{0}', space=vmem, size = 0x9000, scoped, tag = 'input window, operand 1']
    #allocation4 [shape = 'u8[36864]{0}', space=vmem, size = 0x9000, scoped, tag = 'output window, operand 0']
    #allocation5 [shape = 's32[2]{0}', space=sflag, size = 0x8, scoped, tag = 'scoped memory for tpu_custom_call.1']
    %8 = vsyncpa [#allocation5], 0
    %s9 = scalar_lea.sflag [#allocation5], 1
    %10 = vsyncpa %s9, 0
    loop: start=0, step=1, limit=6
    $region2: #{tpu_custom_call.1} parent=1 // loop_pre_header
      _
    $region3: #{tpu_custom_call.1} parent=1 // loop_header
      %s12 = sphi 0, %s16
      %p13 = scmp.ge.s32.totalorder %s12, 6
      %s19 = sphi 0, %s31
      %s20 = sphi 0, %s27
      %s21 = sphi 0, %s19
      %s22 = sphi 0, %s20
      %s23 = sphi 0, %s21
      %s24 = sphi 0, %s22
      %s36 = sphi 0, %s38
      %s39 = sphi 0, %s36
      %s40 = sphi 0, %s39
      %s56 = sphi 0, %s40
      %s62 = sphi 0, %s64
      %s65 = sphi 0, %s62
      %s66 = sphi 0, %s65
      %s82 = sphi 0, %s66
      %s86 = sphi 0, %s86
      %s88 = sphi 0, %s86
      %s89 = sphi 0, %s88
      %s103 = sphi 0, %s89
      %s109 = sphi 0, %s111
      %s112 = sphi 0, %s109
      %s113 = sphi 0, %s112
      %s129 = sphi 0, %s113
    $region4: #{tpu_custom_call.1} parent=1 // loop_header_branch
      %15 = sbr.rel (%p13) target = $region8
    $region5: #{tpu_custom_call.1} parent=1 // loop_body
      %s17 = ssub.s32 %s12, 1
      %s18 = ssub.s32 %s12, 2
      %s25 = sadd.s32 1, %s20
      %p26 = scmp.ge.s32.totalorder %s25, 2
      %s27 = scalar_select %p26, 0, %s25
      %s28 = sadd.s32 1, %s19
      %s29 = scalar_select %p26, %s28, %s19
      %p30 = scmp.ge.s32.totalorder %s29, 2
      %s31 = scalar_select %p30, 0, %s29
      %s32 = ssub.s32 %s19, %s31
      %s33 = ssub.s32 %s20, %s27
      %s34 = sor.u32 %s32, %s33
      %p35 = scmp.eq.s32.totalorder %s34, 0
      %s37 = sadd.s32 %s36, 1
      %s38 = scalar_select %p35, %s36, %s37
      %p41 = pneg %p35
      %p42 = scmp.eq.s32.totalorder %s12, 3
      %p43 = por %p41, %p42
      %p44 = scmp.ne.s32.totalorder %s36, %s39
      %p45 = scmp.eq.s32.totalorder %s12, 0
      %p46 = por %p44, %p45
      %p47 = scmp.ne.s32.totalorder %s36, %s39
      %p48 = scmp.eq.s32.totalorder %s17, 3
      %p49 = por %p47, %p48
      %p50 = scmp.ne.s32.totalorder %s39, %s40
      %p51 = scmp.eq.s32.totalorder %s17, 0
      %p52 = por %p50, %p51
      %p53 = scmp.ne.s32.totalorder %s39, %s40
      %p54 = scmp.eq.s32.totalorder %s18, 3
      %p55 = por %p53, %p54
      %p57 = scmp.ne.s32.totalorder %s40, %s56
      %p58 = scmp.eq.s32.totalorder %s18, 0
      %p59 = por %p57, %p58
      %s60 = ssub.s32 %s20, %s27
      %p61 = scmp.eq.s32.totalorder %s60, 0
      %s63 = sadd.s32 %s62, 1
      %s64 = scalar_select %p61, %s62, %s63
      %p67 = pneg %p61
      %p68 = scmp.eq.s32.totalorder %s12, 3
      %p69 = por %p67, %p68
      %p70 = scmp.ne.s32.totalorder %s62, %s65
      %p71 = scmp.eq.s32.totalorder %s12, 0
      %p72 = por %p70, %p71
      %p73 = scmp.ne.s32.totalorder %s62, %s65
      %p74 = scmp.eq.s32.totalorder %s17, 3
      %p75 = por %p73, %p74
      %p76 = scmp.ne.s32.totalorder %s65, %s66
      %p77 = scmp.eq.s32.totalorder %s17, 0
      %p78 = por %p76, %p77
      %p79 = scmp.ne.s32.totalorder %s65, %s66
      %p80 = scmp.eq.s32.totalorder %s18, 3
      %p81 = por %p79, %p80
      %p83 = scmp.ne.s32.totalorder %s66, %s82
      %p84 = scmp.eq.s32.totalorder %s18, 0
      %p85 = por %p83, %p84
      %s87 = sadd.s32 %s86, 1
      %p90 = scmp.eq.s32.totalorder %s12, 3
      %p91 = scmp.ne.s32.totalorder %s86, %s88
      %p92 = scmp.eq.s32.totalorder %s12, 0
      %p93 = por %p91, %p92
      %p94 = scmp.ne.s32.totalorder %s86, %s88
      %p95 = scmp.eq.s32.totalorder %s17, 3
      %p96 = por %p94, %p95
      %p97 = scmp.ne.s32.totalorder %s88, %s89
      %p98 = scmp.eq.s32.totalorder %s17, 0
      %p99 = por %p97, %p98
      %p100 = scmp.ne.s32.totalorder %s88, %s89
      %p101 = scmp.eq.s32.totalorder %s18, 3
      %p102 = por %p100, %p101
      %p104 = scmp.ne.s32.totalorder %s89, %s103
      %p105 = scmp.eq.s32.totalorder %s18, 0
      %p106 = por %p104, %p105
      %s107 = ssub.s32 %s19, %s31
      %p108 = scmp.eq.s32.totalorder %s107, 0
      %s110 = sadd.s32 %s109, 1
      %s111 = scalar_select %p108, %s109, %s110
      %p114 = pneg %p108
      %p115 = scmp.eq.s32.totalorder %s12, 3
      %p116 = por %p114, %p115
      %p117 = scmp.ne.s32.totalorder %s109, %s112
      %p118 = scmp.eq.s32.totalorder %s12, 0
      %p119 = por %p117, %p118
      %p120 = scmp.ne.s32.totalorder %s109, %s112
      %p121 = scmp.eq.s32.totalorder %s17, 3
      %p122 = por %p120, %p121
      %p123 = scmp.ne.s32.totalorder %s112, %s113
      %p124 = scmp.eq.s32.totalorder %s17, 0
      %p125 = por %p123, %p124
      %p126 = scmp.ne.s32.totalorder %s112, %s113
      %p127 = scmp.eq.s32.totalorder %s18, 3
      %p128 = por %p126, %p127
      %p130 = scmp.ne.s32.totalorder %s113, %s129
      %p131 = scmp.eq.s32.totalorder %s18, 0
      %p132 = por %p130, %p131
      %p133 = scmp.le.s32.totalorder 1, %s12
      %p134 = scmp.lt.s32.totalorder %s12, 5
      %p135 = pnand %p133, %p134
      %p136 = pneg %p135
      // Predicated region
      $region9: #{tpu_custom_call.1} parent=5 // pred_check
        _
      $region10: #{tpu_custom_call.1} parent=5 // pred_check_branch
        %138 = sbr.rel (%p135) target = $region12
      $region11: #{tpu_custom_call.1} parent=5 // pred_region
        %s139 = ssub.s32 %s12, 1
        // Predicated region
        $region13: #{tpu_custom_call.1} parent=11 // pred_check
          %p140 = pneg %p99
        $region14: #{tpu_custom_call.1} parent=11 // pred_check_branch
          %142 = sbr.rel (%p140) target = $region16
        $region15: #{tpu_custom_call.1} parent=11 // pred_region
          _
        $region16: #{tpu_custom_call.1} parent=11 // pred_fallthru
          _
      $region12: #{tpu_custom_call.1} parent=5 // pred_fallthru
        _
      %p143 = scmp.lt.s32.totalorder %s12, 4
      // Predicated region
      $region17: #{tpu_custom_call.1} parent=5 // pred_check
        %p144 = pneg %p143
      $region18: #{tpu_custom_call.1} parent=5 // pred_check_branch
        %146 = sbr.rel (%p144) target = $region20
      $region19: #{tpu_custom_call.1} parent=5 // pred_region
        // Predicated region
        $region21: #{tpu_custom_call.1} parent=19 // pred_check
          %p147 = pneg %p46
        $region22: #{tpu_custom_call.1} parent=19 // pred_check_branch
          %149 = sbr.rel (%p147) target = $region24
        $region23: #{tpu_custom_call.1} parent=19 // pred_region
          %s150 = smul.u32 16, %s20
          %p151 = scmp.lt.s32.totalorder %s19, 1
          %s152 = scalar_select %p151, %s19, 1
          %p153 = scmp.lt.s32.totalorder %s150, 31
          %s154 = scalar_select %p153, %s150, 31
          %s155 = smul.addr %s152, 32
          %s156 = sadd.s32 %s154, %s155
          %s157 = smul.addr %s156, 4
          %s158 = scalar_lea.vmem %s0, %s157
          %s159 = smul.u32 16, %s20
        $region24: #{tpu_custom_call.1} parent=19 // pred_fallthru
          _
        // Predicated region
        $region25: #{tpu_custom_call.1} parent=19 // pred_check
          %p160 = pneg %p72
        $region26: #{tpu_custom_call.1} parent=19 // pred_check_branch
          %162 = sbr.rel (%p160) target = $region28
        $region27: #{tpu_custom_call.1} parent=19 // pred_region
          %s163 = sand.u32 %s62, 1
          %s164 = sand.u32 %s62, 1
          %s165 = smul.addr %s164, 36
          %s166 = scalar_lea.vmem [#allocation3], %s165
          %s167 = smul.addr %s20, 4
          %s168 = scalar_lea.vmem %s1, %s167
          // Predicated region
          $region29: #{tpu_custom_call.1} parent=27 // pred_check
            _
          $region30: #{tpu_custom_call.1} parent=27 // pred_check_branch
            %170 = sbr.rel (0) target = $region32
          $region31: #{tpu_custom_call.1} parent=27 // pred_region
            // Predicated region
            $region33: #{tpu_custom_call.1} parent=31 // pred_check
              _
            $region34: #{tpu_custom_call.1} parent=31 // pred_check_branch
              %172 = sbr.rel target = $region36
            $region35: #{tpu_custom_call.1} parent=31 // pred_region
              // Predicated region
              $region48: #{tpu_custom_call.1} parent=35 // pred_check
                _
              $region49: #{tpu_custom_call.1} parent=35 // pred_check_branch
                %204 = sbr.rel (0) target = $region51
              $region50: #{tpu_custom_call.1} parent=35 // pred_region
                loop: start=0, step=1, limit=1
                $region52: #{tpu_custom_call.1} parent=50 // loop_pre_header
                  _
                $region53: #{tpu_custom_call.1} parent=50 // loop_header
                  %s206 = sphi 0, %s210
                  %p207 = scmp.ge.s32.totalorder %s206, 1
                  %s211 = sphi %s168, %s168
                  %s212 = sphi %s166, %s166
                $region54: #{tpu_custom_call.1} parent=50 // loop_header_branch
                  %209 = sbr.rel (%p207) target = $region58
                $region55: #{tpu_custom_call.1} parent=50 // loop_body
                  _
                $region56: #{tpu_custom_call.1} parent=50 // loop_footer
                  %s210 = sadd.s32 1, %s206
                $region57: #{tpu_custom_call.1} parent=50 // loop_footer_branch
                  %205 = sbr.rel target = $region53
                $region58: #{tpu_custom_call.1} parent=50 // loop_exit
                  _
                %s214 = ssub.s32 16, 1
                loop: start=0, step=1, limit=1
                $region59: #{tpu_custom_call.1} parent=50 // loop_pre_header
                  _
                $region60: #{tpu_custom_call.1} parent=50 // loop_header
                  %s216 = sphi 0, %s220
                  %p217 = scmp.ge.s32.totalorder %s216, 1
                  %s221 = sphi %s168, %s168
                  %s222 = sphi %s166, %s166
                $region61: #{tpu_custom_call.1} parent=50 // loop_header_branch
                  %219 = sbr.rel (%p217) target = $region65
                $region62: #{tpu_custom_call.1} parent=50 // loop_body
                  %v223 = vld [vmem:[%s221] sm:%s214]
                  %224 = vst [vmem:[%s222] sm:%s214] %v223
                  %v225 = vld [vmem:[%s221 + $0x8] sm:%s214]
                  %226 = vst [vmem:[%s222 + $0x4] sm:%s214] %v225
                  %v227 = vld [vmem:[%s221 + $0x10] sm:%s214]
                  %228 = vst [vmem:[%s222 + $0x8] sm:%s214] %v227
                  %v229 = vld [vmem:[%s221 + $0x18] sm:%s214]
                  %230 = vst [vmem:[%s222 + $0xc] sm:%s214] %v229
                  %v231 = vld [vmem:[%s221 + $0x20] sm:%s214]
                  %232 = vst [vmem:[%s222 + $0x10] sm:%s214] %v231
                  %v233 = vld [vmem:[%s221 + $0x28] sm:%s214]
                  %234 = vst [vmem:[%s222 + $0x14] sm:%s214] %v233
                  %v235 = vld [vmem:[%s221 + $0x30] sm:%s214]
                  %236 = vst [vmem:[%s222 + $0x18] sm:%s214] %v235
                  %v237 = vld [vmem:[%s221 + $0x38] sm:%s214]
                  %238 = vst [vmem:[%s222 + $0x1c] sm:%s214] %v237
                  %v239 = vld [vmem:[%s221 + $0x40] sm:%s214]
                  %240 = vst [vmem:[%s222 + $0x20] sm:%s214] %v239
                $region63: #{tpu_custom_call.1} parent=50 // loop_footer
                  %s220 = sadd.s32 1, %s216
                $region64: #{tpu_custom_call.1} parent=50 // loop_footer_branch
                  %215 = sbr.rel target = $region60
                $region65: #{tpu_custom_call.1} parent=50 // loop_exit
                  _
              $region51: #{tpu_custom_call.1} parent=35 // pred_fallthru
                _
            $region36: #{tpu_custom_call.1} parent=31 // pred_fallthru
              _
            // Predicated region
            $region37: #{tpu_custom_call.1} parent=31 // pred_check
              _
            $region38: #{tpu_custom_call.1} parent=31 // pred_check_branch
              %174 = sbr.rel (0) target = $region40
            $region39: #{tpu_custom_call.1} parent=31 // pred_region
              %s176 = ssub.s32 16, 1
              loop: start=0, step=1, limit=1
              $region41: #{tpu_custom_call.1} parent=39 // loop_pre_header
                _
              $region42: #{tpu_custom_call.1} parent=39 // loop_header
                %s178 = sphi 0, %s182
                %p179 = scmp.ge.s32.totalorder %s178, 1
                %s183 = sphi %s168, %s168
                %s184 = sphi %s166, %s166
              $region43: #{tpu_custom_call.1} parent=39 // loop_header_branch
                %181 = sbr.rel (%p179) target = $region47
              $region44: #{tpu_custom_call.1} parent=39 // loop_body
                %v185 = vld [vmem:[%s183] sm:%s176]
                %186 = vst [vmem:[%s184] sm:%s176] %v185
                %v187 = vld [vmem:[%s183 + $0x8] sm:%s176]
                %188 = vst [vmem:[%s184 + $0x4] sm:%s176] %v187
                %v189 = vld [vmem:[%s183 + $0x10] sm:%s176]
                %190 = vst [vmem:[%s184 + $0x8] sm:%s176] %v189
                %v191 = vld [vmem:[%s183 + $0x18] sm:%s176]
                %192 = vst [vmem:[%s184 + $0xc] sm:%s176] %v191
                %v193 = vld [vmem:[%s183 + $0x20] sm:%s176]
                %194 = vst [vmem:[%s184 + $0x10] sm:%s176] %v193
                %v195 = vld [vmem:[%s183 + $0x28] sm:%s176]
                %196 = vst [vmem:[%s184 + $0x14] sm:%s176] %v195
                %v197 = vld [vmem:[%s183 + $0x30] sm:%s176]
                %198 = vst [vmem:[%s184 + $0x18] sm:%s176] %v197
                %v199 = vld [vmem:[%s183 + $0x38] sm:%s176]
                %200 = vst [vmem:[%s184 + $0x1c] sm:%s176] %v199
                %v201 = vld [vmem:[%s183 + $0x40] sm:%s176]
                %202 = vst [vmem:[%s184 + $0x20] sm:%s176] %v201
              $region45: #{tpu_custom_call.1} parent=39 // loop_footer
                %s182 = sadd.s32 1, %s178
              $region46: #{tpu_custom_call.1} parent=39 // loop_footer_branch
                %177 = sbr.rel target = $region42
              $region47: #{tpu_custom_call.1} parent=39 // loop_exit
                _
            $region40: #{tpu_custom_call.1} parent=31 // pred_fallthru
              _
          $region32: #{tpu_custom_call.1} parent=27 // pred_fallthru
            _
          %241 = vnop
        $region28: #{tpu_custom_call.1} parent=19 // pred_fallthru
          _
      $region20: #{tpu_custom_call.1} parent=5 // pred_fallthru
        _
      %p242 = scmp.le.s32.totalorder 1, %s12
      %p243 = scmp.lt.s32.totalorder %s12, 5
      %p244 = pnand %p242, %p243
      %p245 = pneg %p244
      // Predicated region
      $region66: #{tpu_custom_call.1} parent=5 // pred_check
        _
      $region67: #{tpu_custom_call.1} parent=5 // pred_check_branch
        %247 = sbr.rel (%p244) target = $region69
      $region68: #{tpu_custom_call.1} parent=5 // pred_region
        %s248 = ssub.s32 %s12, 1
        %s249 = sand.u32 %s65, 1
        %s250 = sand.u32 %s65, 1
        %s251 = smul.addr %s250, 36
        %s252 = scalar_lea.vmem [#allocation3], %s251
        // Predicated region
        $region70: #{tpu_custom_call.1} parent=68 // pred_check
          %p253 = pneg %p78
        $region71: #{tpu_custom_call.1} parent=68 // pred_check_branch
          %255 = sbr.rel (%p253) target = $region73
        $region72: #{tpu_custom_call.1} parent=68 // pred_region
          _
        $region73: #{tpu_custom_call.1} parent=68 // pred_fallthru
          _
        %s256 = smul.u32 16, %s22
        %p257 = scmp.lt.s32.totalorder %s21, 1
        %s258 = scalar_select %p257, %s21, 1
        %p259 = scmp.lt.s32.totalorder %s256, 31
        %s260 = scalar_select %p259, %s256, 31
        %s261 = smul.addr %s258, 32
        %s262 = sadd.s32 %s260, %s261
        %s263 = smul.addr %s262, 4
        %s264 = scalar_lea.vmem %s0, %s263
        %p265 = pneg %p52
        %p266 = pneg %p49
        %s267 = sand.u32 %s65, 1
        %s268 = sand.u32 %s65, 1
        %s269 = smul.addr %s268, 36
        %s270 = scalar_lea.vmem [#allocation3], %s269
        %p271 = pneg %p78
        %p272 = pneg %p75
        %p273 = pneg %p99
        %p274 = pneg %p96
        %p275 = pneg %p125
        %p276 = pneg %p122
        %s277 = sand.u32 %s112, 1
        %s278 = scalar_lea.sflag [#allocation5], %s277
        %s279 = sand.u32 %s112, 1
        %s280 = smul.addr %s279, 36
        %s281 = scalar_lea.vmem [#allocation4], %s280
        %s282 = smul.u32 16, %s22
        %p283 = scmp.lt.s32.totalorder %s21, 1
        %s284 = scalar_select %p283, %s21, 1
        %p285 = scmp.lt.s32.totalorder %s282, 31
        %s286 = scalar_select %p285, %s282, 31
        %s287 = smul.addr %s284, 32
        %s288 = sadd.s32 %s286, %s287
        %s289 = smul.addr %s288, 4
        %s290 = scalar_lea.vmem %s0, %s289
        %s291 = smul.u32 16, %s22
        %p293 = scmp.eq.s32.totalorder %s22, 0
        // Predicated region
        $region74: #{tpu_custom_call.1} parent=68 // pred_check
          %p294 = pneg %p293
        $region75: #{tpu_custom_call.1} parent=68 // pred_check_branch
          %296 = sbr.rel (%p294) target = $region77
        $region76: #{tpu_custom_call.1} parent=68 // pred_region
          %vm297 = vcmask 64512
          %298 = vst.msk [vmem:[#allocation2] sm:$0xff] %vm297, 0.0
          %299 = vst.msk [vmem:[#allocation2 + $0x8] sm:$0xff] %vm297, 0.0
          %300 = vst.msk [vmem:[#allocation2 + $0x10] sm:$0xff] %vm297, 0.0
          %301 = vst.msk [vmem:[#allocation2 + $0x18] sm:$0xff] %vm297, 0.0
          %302 = vst.msk [vmem:[#allocation2 + $0x20] sm:$0xff] %vm297, 0.0
          %303 = vst.msk [vmem:[#allocation2 + $0x28] sm:$0xff] %vm297, 0.0
          %304 = vst.msk [vmem:[#allocation2 + $0x30] sm:$0xff] %vm297, 0.0
          %305 = vst.msk [vmem:[#allocation2 + $0x38] sm:$0xff] %vm297, 0.0
          %306 = vst.msk [vmem:[#allocation2 + $0x40] sm:$0xff] %vm297, 0.0
        $region77: #{tpu_custom_call.1} parent=68 // pred_fallthru
          _
        %v307 = vld [vmem:[#allocation2] sm:$0xff]
        %v308 = vld [vmem:[#allocation2 + $0x8] sm:$0xff]
        %v309 = vld [vmem:[#allocation2 + $0x10] sm:$0xff]
        %v310 = vld [vmem:[#allocation2 + $0x18] sm:$0xff]
        %v311 = vld [vmem:[#allocation2 + $0x20] sm:$0xff]
        %v312 = vld [vmem:[#allocation2 + $0x28] sm:$0xff]
        %v313 = vld [vmem:[#allocation2 + $0x30] sm:$0xff]
        %v314 = vld [vmem:[#allocation2 + $0x38] sm:$0xff]
        %v315 = vld [vmem:[#allocation2 + $0x40] sm:$0xff]
        %v316 = vld [vmem:[%s252] sm:$0xf]
        %v317 = vld [vmem:[%s252 + $0x4] sm:$0xf]
        %v318 = vld [vmem:[%s252 + $0x8] sm:$0xf]
        %v319 = vld [vmem:[%s252 + $0xc] sm:$0xf]
        %v320 = vld [vmem:[%s252 + $0x10] sm:$0xf]
        %v321 = vld [vmem:[%s252 + $0x14] sm:$0xf]
        %v322 = vld [vmem:[%s252 + $0x18] sm:$0xf]
        %v323 = vld [vmem:[%s252 + $0x1c] sm:$0xf]
        %v324 = vld [vmem:[%s252 + $0x20] sm:$0xf]
        %v325 = vld [vmem:[%s290] sm:$0xf]
        %v326 = vld [vmem:[%s290 + $0x4] sm:$0xf]
        %v327 = vld [vmem:[%s290 + $0x8] sm:$0xf]
        %v328 = vld [vmem:[%s290 + $0xc] sm:$0xf]
        %v329 = vld [vmem:[%s290 + $0x10] sm:$0xf]
        %v330 = vld [vmem:[%s290 + $0x14] sm:$0xf]
        %v331 = vld [vmem:[%s290 + $0x18] sm:$0xf]
        %v332 = vld [vmem:[%s290 + $0x1c] sm:$0xf]
        %v333 = vld [vmem:[%s290 + $0x20] sm:$0xf]
        %v334 = vld [vmem:[%s290 + $0x24] sm:$0xf]
        %v335 = vld [vmem:[%s290 + $0x28] sm:$0xf]
        %v336 = vld [vmem:[%s290 + $0x2c] sm:$0xf]
        %v337 = vld [vmem:[%s290 + $0x30] sm:$0xf]
        %v338 = vld [vmem:[%s290 + $0x34] sm:$0xf]
        %v339 = vld [vmem:[%s290 + $0x38] sm:$0xf]
        %v340 = vld [vmem:[%s290 + $0x3c] sm:$0xf]
        %v350 = vunpack.c.l.b16 %v316
        %v351 = vunpack.c.l.b16 %v317
        %v352 = vunpack.c.l.b16 %v318
        %v353 = vunpack.c.l.b16 %v319
        %v354 = vunpack.c.l.b16 %v320
        %v355 = vunpack.c.l.b16 %v321
        %v356 = vunpack.c.l.b16 %v322
        %v357 = vunpack.c.l.b16 %v323
        %v358 = vunpack.c.l.b16 %v324
        %v359 = vpack.c.b16 %v351, %v350
        %v360 = vpack.c.b16 %v353, %v352
        %v361 = vpack.c.b16 %v355, %v354
        %v362 = vpack.c.b16 %v357, %v356
        %v363 = vpack.c.b16 %v358, %v358
        %v385 = vunpack.c.l.b16 %v325
        %v386 = vunpack.c.l.b16 %v326
        %v387 = vunpack.c.l.b16 %v327
        %v388 = vunpack.c.l.b16 %v328
        %v389 = vunpack.c.l.b16 %v329
        %v390 = vunpack.c.l.b16 %v330
        %v391 = vunpack.c.l.b16 %v331
        %v392 = vunpack.c.l.b16 %v332
        %v393 = vunpack.c.l.b16 %v333
        %v394 = vunpack.c.l.b16 %v334
        %v395 = vunpack.c.l.b16 %v335
        %v396 = vunpack.c.l.b16 %v336
        %v397 = vunpack.c.l.b16 %v337
        %v398 = vunpack.c.l.b16 %v338
        %v399 = vunpack.c.l.b16 %v339
        %v400 = vunpack.c.l.b16 %v340
        %v401 = vpack.c.b16 %v386, %v385
        %v402 = vpack.c.b16 %v388, %v387
        %v403 = vpack.c.b16 %v390, %v389
        %v404 = vpack.c.b16 %v392, %v391
        %v405 = vpack.c.b16 %v394, %v393
        %v406 = vpack.c.b16 %v396, %v395
        %v407 = vpack.c.b16 %v398, %v397
        %v408 = vpack.c.b16 %v400, %v399
        %417 = vmatprep.subr.bf16.mxu0 0
        %418 = vmatpush1.bf16.msra.mxu0 %v408
        %419 = vmatprep.subr.bf16.mxu0 0
        %420 = vmatpush1.bf16.msra.mxu0 %v407
        %421 = vmatprep.subr.bf16.mxu0 0
        %422 = vmatpush1.bf16.msra.mxu0 %v406
        %423 = vmatprep.subr.bf16.mxu0 0
        %424 = vmatpush1.bf16.msra.mxu0 %v405
        %425 = vmatprep.subr.bf16.mxu0 0
        %426 = vmatpush1.bf16.msra.mxu0 %v404
        %427 = vmatprep.subr.bf16.mxu0 0
        %428 = vmatpush1.bf16.msra.mxu0 %v403
        %429 = vmatprep.subr.bf16.mxu0 0
        %430 = vmatpush1.bf16.msra.mxu0 %v402
        %431 = vmatprep.subr.bf16.mxu0 0
        %432 = vmatpush1.bf16.msra.mxu0 %v401
        %433 = vmatprep.subr.bf16.mxu0 0
        %434 = vmatpush2.bf16.msra.mxu0 0
        %435 = vmatprep.subr.bf16.mxu0 0
        %436 = vmatpush2.bf16.msra.mxu0 0
        %437 = vmatprep.subr.bf16.mxu0 0
        %438 = vmatpush2.bf16.msra.mxu0 0
        %439 = vmatprep.subr.bf16.mxu0 0
        %440 = vmatpush2.bf16.msra.mxu0 0
        %441 = vmatprep.subr.bf16.mxu0 0
        %442 = vmatpush2.bf16.msra.mxu0 0
        %443 = vmatprep.subr.bf16.mxu0 0
        %444 = vmatpush2.bf16.msra.mxu0 0
        %445 = vmatprep.subr.bf16.mxu0 0
        %446 = vmatpush2.bf16.msra.mxu0 0
        %447 = vmatprep.subr.bf16.mxu0 0
        %448 = vmatpush2.bf16.msra.mxu0 0
        %449 = vmatprep.mubr.bf16.mxu0 0
        %450 = vmatmul.mubr.bf16.gmra.mxu0 %v359
        %v451 = vpop.f32.mrf.mxu0
        %v452 = vadd.f32 0.0, %v451
        %v453 = vpop.f32.mrf.mxu0
        %v454 = vpop.f32.mrf.mxu0
        %v455 = vadd.f32 0.0, %v454
        %v456 = vpop.f32.mrf.mxu0
        %457 = vmatprep.mubr.bf16.mxu0 0
        %458 = vmatmul.mubr.bf16.gmra.mxu0 %v360
        %v459 = vpop.f32.mrf.mxu0
        %v460 = vadd.f32 0.0, %v459
        %v461 = vpop.f32.mrf.mxu0
        %v462 = vpop.f32.mrf.mxu0
        %v463 = vadd.f32 0.0, %v462
        %v464 = vpop.f32.mrf.mxu0
        %465 = vmatprep.mubr.bf16.mxu0 0
        %466 = vmatmul.mubr.bf16.gmra.mxu0 %v361
        %v467 = vpop.f32.mrf.mxu0
        %v468 = vadd.f32 0.0, %v467
        %v469 = vpop.f32.mrf.mxu0
        %v470 = vpop.f32.mrf.mxu0
        %v471 = vadd.f32 0.0, %v470
        %v472 = vpop.f32.mrf.mxu0
        %473 = vmatprep.mubr.bf16.mxu0 0
        %474 = vmatmul.mubr.bf16.gmra.mxu0 %v362
        %v475 = vpop.f32.mrf.mxu0
        %v476 = vadd.f32 0.0, %v475
        %v477 = vpop.f32.mrf.mxu0
        %v478 = vpop.f32.mrf.mxu0
        %v479 = vadd.f32 0.0, %v478
        %v480 = vpop.f32.mrf.mxu0
        %481 = vmatprep.mubr.bf16.mxu0 0
        %482 = vmatmul.mubr.bf16.gmra.mxu0 %v363
        %v483 = vpop.f32.mrf.mxu0
        %v484 = vadd.f32 0.0, %v483
        %v485 = vpop.f32.mrf.mxu0
        %v486 = vpop.f32.mrf.mxu0
        %v487 = vpop.f32.mrf.mxu0
        %488 = vdwg.mxu0
        %v489 = vadd.f32 %v307, %v452
        %v490 = vadd.f32 %v308, %v455
        %v491 = vadd.f32 %v309, %v460
        %v492 = vadd.f32 %v310, %v463
        %v493 = vadd.f32 %v311, %v468
        %v494 = vadd.f32 %v312, %v471
        %v495 = vadd.f32 %v313, %v476
        %v496 = vadd.f32 %v314, %v479
        %v497 = vadd.f32 %v315, %v484
        %vm498 = vcmask 64512
        %499 = vst.msk [vmem:[#allocation2] sm:$0xff] %vm498, %v489
        %500 = vst.msk [vmem:[#allocation2 + $0x8] sm:$0xff] %vm498, %v490
        %501 = vst.msk [vmem:[#allocation2 + $0x10] sm:$0xff] %vm498, %v491
        %502 = vst.msk [vmem:[#allocation2 + $0x18] sm:$0xff] %vm498, %v492
        %503 = vst.msk [vmem:[#allocation2 + $0x20] sm:$0xff] %vm498, %v493
        %504 = vst.msk [vmem:[#allocation2 + $0x28] sm:$0xff] %vm498, %v494
        %505 = vst.msk [vmem:[#allocation2 + $0x30] sm:$0xff] %vm498, %v495
        %506 = vst.msk [vmem:[#allocation2 + $0x38] sm:$0xff] %vm498, %v496
        %507 = vst.msk [vmem:[#allocation2 + $0x40] sm:$0xff] %vm498, %v497
        %p508 = scmp.eq.s32.totalorder %s22, 1
        // Predicated region
        $region78: #{tpu_custom_call.1} parent=68 // pred_check
          %p509 = pneg %p508
        $region79: #{tpu_custom_call.1} parent=68 // pred_check_branch
          %511 = sbr.rel (%p509) target = $region81
        $region80: #{tpu_custom_call.1} parent=68 // pred_region
          %v512 = vld [vmem:[#allocation2] sm:$0xff]
          %v513 = vld [vmem:[#allocation2 + $0x8] sm:$0xff]
          %v514 = vld [vmem:[#allocation2 + $0x10] sm:$0xff]
          %v515 = vld [vmem:[#allocation2 + $0x18] sm:$0xff]
          %v516 = vld [vmem:[#allocation2 + $0x20] sm:$0xff]
          %v517 = vld [vmem:[#allocation2 + $0x28] sm:$0xff]
          %v518 = vld [vmem:[#allocation2 + $0x30] sm:$0xff]
          %v519 = vld [vmem:[#allocation2 + $0x38] sm:$0xff]
          %v520 = vld [vmem:[#allocation2 + $0x40] sm:$0xff]
          %v521 = vpack.c.bf16 %v513, %v512
          %v522 = vpack.c.bf16 %v515, %v514
          %v523 = vpack.c.bf16 %v517, %v516
          %v524 = vpack.c.bf16 %v519, %v518
          %v525 = vpack.c.bf16 %v520, %v520
          %v526 = vld [vmem:[%s2] sm:$0xf]
          %v528 = vsel %vm498, %v521, 0
          %vm530 = vcmask 1043456
          %v532 = vsel %vm530, %v526, 0
          %534 = vmatprep.subr.bf16.mxu0 0
          %535 = vmatpush1.bf16.msra.mxu0 0
          %536 = vmatprep.subr.bf16.mxu0 0
          %537 = vmatpush1.bf16.msra.mxu0 0
          %538 = vmatprep.subr.bf16.mxu0 0
          %539 = vmatpush1.bf16.msra.mxu0 0
          %540 = vmatprep.subr.bf16.mxu0 0
          %541 = vmatpush1.bf16.msra.mxu0 0
          %542 = vmatprep.subr.bf16.mxu0 0
          %543 = vmatpush1.bf16.msra.mxu0 0
          %544 = vmatprep.subr.bf16.mxu0 0
          %545 = vmatpush1.bf16.msra.mxu0 0
          %546 = vmatprep.subr.bf16.mxu0 0
          %547 = vmatpush1.bf16.msra.mxu0 0
          %548 = vmatprep.subr.bf16.mxu0 0
          %549 = vmatpush1.bf16.msra.mxu0 %v532
          %550 = vmatprep.subr.bf16.mxu0 0
          %551 = vmatpush2.bf16.msra.mxu0 0
          %552 = vmatprep.subr.bf16.mxu0 0
          %553 = vmatpush2.bf16.msra.mxu0 0
          %554 = vmatprep.subr.bf16.mxu0 0
          %555 = vmatpush2.bf16.msra.mxu0 0
          %556 = vmatprep.subr.bf16.mxu0 0
          %557 = vmatpush2.bf16.msra.mxu0 0
          %558 = vmatprep.subr.bf16.mxu0 0
          %559 = vmatpush2.bf16.msra.mxu0 0
          %560 = vmatprep.subr.bf16.mxu0 0
          %561 = vmatpush2.bf16.msra.mxu0 0
          %562 = vmatprep.subr.bf16.mxu0 0
          %563 = vmatpush2.bf16.msra.mxu0 0
          %564 = vmatprep.subr.bf16.mxu0 0
          %565 = vmatpush2.bf16.msra.mxu0 0
          %566 = vmatprep.mubr.bf16.mxu0 0
          %567 = vmatmul.mubr.bf16.gmra.mxu0 %v528
          %v568 = vpop.f32.mrf.mxu0
          %v569 = vadd.f32 0.0, %v568
          %v570 = vpop.f32.mrf.mxu0
          %v571 = vpop.f32.mrf.mxu0
          %v572 = vpop.f32.mrf.mxu0
          %573 = vdwg.mxu0
          %v574 = vpack.c.bf16 %v569, %v569
          %575 = vst [vmem:[%s281] sm:$0xf] %v574
          %s576 = scalar_lea.vmem %s2, 4
          %v577 = vld [vmem:[%s576] sm:$0xf]
          %v579 = vrot.slane %v521, 4
          %v581 = vsel %vm498, %v579, 0
          %v584 = vsel %vm530, %v577, 0
          %586 = vmatprep.subr.bf16.mxu0 0
          %587 = vmatpush1.bf16.msra.mxu0 0
          %588 = vmatprep.subr.bf16.mxu0 0
          %589 = vmatpush1.bf16.msra.mxu0 0
          %590 = vmatprep.subr.bf16.mxu0 0
          %591 = vmatpush1.bf16.msra.mxu0 0
          %592 = vmatprep.subr.bf16.mxu0 0
          %593 = vmatpush1.bf16.msra.mxu0 0
          %594 = vmatprep.subr.bf16.mxu0 0
          %595 = vmatpush1.bf16.msra.mxu0 0
          %596 = vmatprep.subr.bf16.mxu0 0
          %597 = vmatpush1.bf16.msra.mxu0 0
          %598 = vmatprep.subr.bf16.mxu0 0
          %599 = vmatpush1.bf16.msra.mxu0 0
          %600 = vmatprep.subr.bf16.mxu0 0
          %601 = vmatpush1.bf16.msra.mxu0 %v584
          %602 = vmatprep.subr.bf16.mxu0 0
          %603 = vmatpush2.bf16.msra.mxu0 0
          %604 = vmatprep.subr.bf16.mxu0 0
          %605 = vmatpush2.bf16.msra.mxu0 0
          %606 = vmatprep.subr.bf16.mxu0 0
          %607 = vmatpush2.bf16.msra.mxu0 0
          %608 = vmatprep.subr.bf16.mxu0 0
          %609 = vmatpush2.bf16.msra.mxu0 0
          %610 = vmatprep.subr.bf16.mxu0 0
          %611 = vmatpush2.bf16.msra.mxu0 0
          %612 = vmatprep.subr.bf16.mxu0 0
          %613 = vmatpush2.bf16.msra.mxu0 0
          %614 = vmatprep.subr.bf16.mxu0 0
          %615 = vmatpush2.bf16.msra.mxu0 0
          %616 = vmatprep.subr.bf16.mxu0 0
          %617 = vmatpush2.bf16.msra.mxu0 0
          %618 = vmatprep.mubr.bf16.mxu0 0
          %619 = vmatmul.mubr.bf16.gmra.mxu0 %v581
          %v620 = vpop.f32.mrf.mxu0
          %v621 = vadd.f32 0.0, %v620
          %v622 = vpop.f32.mrf.mxu0
          %v623 = vpop.f32.mrf.mxu0
          %v624 = vpop.f32.mrf.mxu0
          %625 = vdwg.mxu0
          %v626 = vpack.c.bf16 %v621, %v621
          %627 = vst [vmem:[%s281 + $0x4] sm:$0xf] %v626
          %s628 = scalar_lea.vmem %s2, 8
          %v629 = vld [vmem:[%s628] sm:$0xf]
          %v631 = vsel %vm498, %v522, 0
          %v634 = vsel %vm530, %v629, 0
          %636 = vmatprep.subr.bf16.mxu0 0
          %637 = vmatpush1.bf16.msra.mxu0 0
          %638 = vmatprep.subr.bf16.mxu0 0
          %639 = vmatpush1.bf16.msra.mxu0 0
          %640 = vmatprep.subr.bf16.mxu0 0
          %641 = vmatpush1.bf16.msra.mxu0 0
          %642 = vmatprep.subr.bf16.mxu0 0
          %643 = vmatpush1.bf16.msra.mxu0 0
          %644 = vmatprep.subr.bf16.mxu0 0
          %645 = vmatpush1.bf16.msra.mxu0 0
          %646 = vmatprep.subr.bf16.mxu0 0
          %647 = vmatpush1.bf16.msra.mxu0 0
          %648 = vmatprep.subr.bf16.mxu0 0
          %649 = vmatpush1.bf16.msra.mxu0 0
          %650 = vmatprep.subr.bf16.mxu0 0
          %651 = vmatpush1.bf16.msra.mxu0 %v634
          %652 = vmatprep.subr.bf16.mxu0 0
          %653 = vmatpush2.bf16.msra.mxu0 0
          %654 = vmatprep.subr.bf16.mxu0 0
          %655 = vmatpush2.bf16.msra.mxu0 0
          %656 = vmatprep.subr.bf16.mxu0 0
          %657 = vmatpush2.bf16.msra.mxu0 0
          %658 = vmatprep.subr.bf16.mxu0 0
          %659 = vmatpush2.bf16.msra.mxu0 0
          %660 = vmatprep.subr.bf16.mxu0 0
          %661 = vmatpush2.bf16.msra.mxu0 0
          %662 = vmatprep.subr.bf16.mxu0 0
          %663 = vmatpush2.bf16.msra.mxu0 0
          %664 = vmatprep.subr.bf16.mxu0 0
          %665 = vmatpush2.bf16.msra.mxu0 0
          %666 = vmatprep.subr.bf16.mxu0 0
          %667 = vmatpush2.bf16.msra.mxu0 0
          %668 = vmatprep.mubr.bf16.mxu0 0
          %669 = vmatmul.mubr.bf16.gmra.mxu0 %v631
          %v670 = vpop.f32.mrf.mxu0
          %v671 = vadd.f32 0.0, %v670
          %v672 = vpop.f32.mrf.mxu0
          %v673 = vpop.f32.mrf.mxu0
          %v674 = vadd.f32 0.0, %v673
          %v675 = vpop.f32.mrf.mxu0
          %676 = vdwg.mxu0
          %v677 = vpack.c.bf16 %v674, %v671
          %v679 = vunpack.c.l.b16 %v677
          %v680 = vunpack.c.h.b16 %v677
          %v681 = vpack.c.b16 %v679, %v679
          %v682 = vpack.c.b16 %v680, %v680
          %685 = vst [vmem:[%s281 + $0x8] sm:$0xf] %v681
          %686 = vst [vmem:[%s281 + $0xc] sm:$0xf] %v682
          %s687 = scalar_lea.vmem %s2, 12
          %v688 = vld [vmem:[%s687] sm:$0xf]
          %v690 = vsel %vm498, %v523, 0
          %v693 = vsel %vm498, %v524, 0
          %v696 = vsel %vm498, %v525, 0
          %v699 = vsel %vm530, %v688, 0
          %701 = vmatprep.subr.bf16.mxu0 0
          %702 = vmatpush1.bf16.msra.mxu0 0
          %703 = vmatprep.subr.bf16.mxu0 0
          %704 = vmatpush1.bf16.msra.mxu0 0
          %705 = vmatprep.subr.bf16.mxu0 0
          %706 = vmatpush1.bf16.msra.mxu0 0
          %707 = vmatprep.subr.bf16.mxu0 0
          %708 = vmatpush1.bf16.msra.mxu0 0
          %709 = vmatprep.subr.bf16.mxu0 0
          %710 = vmatpush1.bf16.msra.mxu0 0
          %711 = vmatprep.subr.bf16.mxu0 0
          %712 = vmatpush1.bf16.msra.mxu0 0
          %713 = vmatprep.subr.bf16.mxu0 0
          %714 = vmatpush1.bf16.msra.mxu0 0
          %715 = vmatprep.subr.bf16.mxu0 0
          %716 = vmatpush1.bf16.msra.mxu0 %v699
          %717 = vmatprep.subr.bf16.mxu0 0
          %718 = vmatpush2.bf16.msra.mxu0 0
          %719 = vmatprep.subr.bf16.mxu0 0
          %720 = vmatpush2.bf16.msra.mxu0 0
          %721 = vmatprep.subr.bf16.mxu0 0
          %722 = vmatpush2.bf16.msra.mxu0 0
          %723 = vmatprep.subr.bf16.mxu0 0
          %724 = vmatpush2.bf16.msra.mxu0 0
          %725 = vmatprep.subr.bf16.mxu0 0
          %726 = vmatpush2.bf16.msra.mxu0 0
          %727 = vmatprep.subr.bf16.mxu0 0
          %728 = vmatpush2.bf16.msra.mxu0 0
          %729 = vmatprep.subr.bf16.mxu0 0
          %730 = vmatpush2.bf16.msra.mxu0 0
          %731 = vmatprep.subr.bf16.mxu0 0
          %732 = vmatpush2.bf16.msra.mxu0 0
          %733 = vmatprep.mubr.bf16.mxu0 0
          %734 = vmatmul.mubr.bf16.gmra.mxu0 %v690
          %v735 = vpop.f32.mrf.mxu0
          %v736 = vadd.f32 0.0, %v735
          %v737 = vpop.f32.mrf.mxu0
          %v738 = vpop.f32.mrf.mxu0
          %v739 = vadd.f32 0.0, %v738
          %v740 = vpop.f32.mrf.mxu0
          %741 = vmatprep.mubr.bf16.mxu0 0
          %742 = vmatmul.mubr.bf16.gmra.mxu0 %v693
          %v743 = vpop.f32.mrf.mxu0
          %v744 = vadd.f32 0.0, %v743
          %v745 = vpop.f32.mrf.mxu0
          %v746 = vpop.f32.mrf.mxu0
          %v747 = vadd.f32 0.0, %v746
          %v748 = vpop.f32.mrf.mxu0
          %749 = vmatprep.mubr.bf16.mxu0 0
          %750 = vmatmul.mubr.bf16.gmra.mxu0 %v696
          %v751 = vpop.f32.mrf.mxu0
          %v752 = vadd.f32 0.0, %v751
          %v753 = vpop.f32.mrf.mxu0
          %v754 = vpop.f32.mrf.mxu0
          %v755 = vpop.f32.mrf.mxu0
          %756 = vdwg.mxu0
          %v757 = vpack.c.bf16 %v739, %v736
          %v758 = vpack.c.bf16 %v747, %v744
          %v759 = vpack.c.bf16 %v752, %v752
          %v763 = vunpack.c.l.b16 %v757
          %v764 = vunpack.c.h.b16 %v757
          %v765 = vunpack.c.l.b16 %v758
          %v766 = vunpack.c.h.b16 %v758
          %v767 = vunpack.c.l.b16 %v759
          %v768 = vpack.c.b16 %v763, %v763
          %v769 = vpack.c.b16 %v764, %v764
          %v770 = vpack.c.b16 %v765, %v765
          %v771 = vpack.c.b16 %v766, %v766
          %v772 = vpack.c.b16 %v767, %v767
          %778 = vst [vmem:[%s281 + $0x10] sm:$0xf] %v768
          %779 = vst [vmem:[%s281 + $0x14] sm:$0xf] %v769
          %780 = vst [vmem:[%s281 + $0x18] sm:$0xf] %v770
          %781 = vst [vmem:[%s281 + $0x1c] sm:$0xf] %v771
          %782 = vst [vmem:[%s281 + $0x20] sm:$0xf] %v772
        $region81: #{tpu_custom_call.1} parent=68 // pred_fallthru
          _
        %s783 = sand.u32 %s112, 1
        %s784 = scalar_lea.sflag [#allocation5], %s783
        %s785 = sand.u32 %s112, 1
        %s786 = smul.addr %s785, 36
        %s787 = scalar_lea.vmem [#allocation4], %s786
        // Predicated region
        $region82: #{tpu_custom_call.1} parent=68 // pred_check
          %p788 = pneg %p122
        $region83: #{tpu_custom_call.1} parent=68 // pred_check_branch
          %790 = sbr.rel (%p788) target = $region85
        $region84: #{tpu_custom_call.1} parent=68 // pred_region
          %s792 = ssub.s32 576, 576
          %793 = vsyncadd %s784, %s792
          %s794 = smul.addr %s21, 9
          %s795 = smul.addr %s794, 64
          %s796 = scalar_lea.hbm %s3, %s795
          %s797 = sshll.u32 %s787, 4
          %s798 = int_to_ptr.vmem [resolvable:$true] %s797
          %803 = dma.vmem_to_hbm [thread:$0]  %s798, 576, %s796, %s784, 64, 64, 4
        $region85: #{tpu_custom_call.1} parent=68 // pred_fallthru
          _
      $region69: #{tpu_custom_call.1} parent=5 // pred_fallthru
        _
      %p804 = scmp.le.s32.totalorder 2, %s12
      // Predicated region
      $region86: #{tpu_custom_call.1} parent=5 // pred_check
        %p805 = pneg %p804
      $region87: #{tpu_custom_call.1} parent=5 // pred_check_branch
        %807 = sbr.rel (%p805) target = $region89
      $region88: #{tpu_custom_call.1} parent=5 // pred_region
        %s808 = ssub.s32 %s12, 2
        // Predicated region
        $region90: #{tpu_custom_call.1} parent=88 // pred_check
          %p809 = pneg %p128
        $region91: #{tpu_custom_call.1} parent=88 // pred_check_branch
          %811 = sbr.rel (%p809) target = $region93
        $region92: #{tpu_custom_call.1} parent=88 // pred_region
          %s812 = sand.u32 %s113, 1
          %s813 = scalar_lea.sflag [#allocation5], %s812
          %s814 = sand.u32 %s113, 1
          %s815 = smul.addr %s814, 36
          %s816 = scalar_lea.vmem [#allocation4], %s815
          %817 = dma.done %s813, 576
        $region93: #{tpu_custom_call.1} parent=88 // pred_fallthru
          _
      $region89: #{tpu_custom_call.1} parent=5 // pred_fallthru
        _
    $region6: #{tpu_custom_call.1} parent=1 // loop_footer
      %s16 = sadd.s32 1, %s12
    $region7: #{tpu_custom_call.1} parent=1 // loop_footer_branch
      %11 = sbr.rel target = $region3
    $region8: #{tpu_custom_call.1} parent=1 // loop_exit
      _
    %818 = vsyncpa [#allocation5], 1
    %s819 = scalar_lea.sflag [#allocation5], 1
    %820 = vsyncpa %s819, 1

</llo_original>
